<compile_context>
chip_gen: v7x
topology: tpu7x:2x2x1
jax: 0.10.0
libtpu: 0.0.40
codegen_flags: <defaults>
</compile_context>

<pallas_src>
import functools

import jax
import jax.numpy as jnp
from jax.experimental import pallas as pl
from jax.experimental.pallas import tpu as pltpu


def _round_up(v, m):
    return -(-v // m) * m


def _parallel_kernel(x_ref, w_ref, b1_ref, b2_ref, o1_ref, o2_ref, acc_ref, *,
                     d1p):
    """One (row-tile, K-tile) step of the fused Parallel(Linear, Linear).

    Both branch matmuls share one MXU matmul against the pre-fused [W1 | W2]
    weight tile; the f32 accumulator lives in VMEM scratch across the K axis,
    and the two lane-dense branch outputs are written on the final K step.
    """
    k = pl.program_id(1)

    @pl.when(k == 0)
    def _init():
        acc_ref[...] = jnp.zeros_like(acc_ref)

    acc_ref[...] += jnp.dot(x_ref[...], w_ref[...],
                            preferred_element_type=jnp.float32)

    @pl.when(k == pl.num_programs(1) - 1)
    def _finalize():
        acc = acc_ref[...]
        o1_ref[...] = (acc[:, :d1p] + b1_ref[...]).astype(o1_ref.dtype)
        o2_ref[...] = (acc[:, d1p:] + b2_ref[...]).astype(o2_ref.dtype)


def _vmem_budget_bytes():
    """Generation-aware (tile-sizing budget, vmem_limit_bytes)."""
    cap = None
    try:
        cap = getattr(pltpu.get_tpu_info(), "vmem_capacity_bytes", None)
    except Exception:
        cap = None
    if cap is None:
        cap = 64 * 1024 * 1024                      # conservative: v7x-sized
    if cap >= 96 * 1024 * 1024:                     # v5e / v6e: 128 MiB physical
        return 96 * 1024 * 1024, 100 * 1024 * 1024
    # v7x: 64 MiB physical -> leave headroom for Mosaic internal scratch,
    # semaphores and DMA descriptors.
    return 40 * 1024 * 1024, 52 * 1024 * 1024


def _choose_tiles(M, dp, d1p, d2p, x_bytes, w_bytes, o_bytes, budget):
    """Pick (row tile TM, contraction tile TK) against an honest VMEM budget."""
    doutp = d1p + d2p

    # K tile: keep the (double-buffered) weight tile under ~40% of the budget
    # so huge D x Dout fused weights never blow VMEM or starve the x/out pipe.
    tk = dp
    w_cap = int(budget * 0.4)
    while tk > 128 and 2 * tk * doutp * w_bytes > w_cap:
        tk = max(128, (tk // 2) // 128 * 128)

    # M tile: largest power of two whose REAL footprint fits
    # (2x-buffered x / weight / outputs + resident f32 accumulator + biases).
    tm = 2048
    while tm > 8:
        need = (2 * tm * tk * x_bytes           # x tile, double buffered
                + 2 * tk * doutp * w_bytes      # weight tile, double buffered
                + 2 * tm * doutp * o_bytes      # both output tiles, 2x buffered
                + tm * doutp * 4                # f32 accumulator scratch
                + 2 * doutp * w_bytes)          # biases (tiny)
        if need <= budget:
            break
        tm //= 2

    # Megacore: keep >= 2 row blocks so the "parallel" axis spans both v7x
    # TensorCores (no cost on single-TC v5e/v6e).
    if M <= 8:
        tm = M
    else:
        half = _round_up(-(-M // 2), 8)
        tm = min(tm, half)
    return tm, tk


def fuse_parallel_params(w1, b1, w2, b2):
    """Fuse + lane-pad the two Linear branches ONCE (outside the hot path)."""
    d_in, d1 = w1.shape
    _, d2 = w2.shape
    dp = _round_up(d_in, 128)
    d1p = _round_up(d1, 128)
    d2p = _round_up(d2, 128)
    w1p = jnp.pad(w1, ((0, dp - d_in), (0, d1p - d1)))
    w2p = jnp.pad(w2, ((0, dp - d_in), (0, d2p - d2)))
    w_cat = jnp.concatenate([w1p, w2p], axis=1)            # (Dp, D1p + D2p)
    b1p = jnp.pad(b1, (0, d1p - d1)).reshape(1, d1p)
    b2p = jnp.pad(b2, (0, d2p - d2)).reshape(1, d2p)
    return w_cat, b1p, b2p, d1, d2


def parallel_forward(x, fused):
    """x: (B, N, D) -> (y1, y2) = (x @ W1 + b1, x @ W2 + b2)."""
    w_cat, b1p, b2p, d1, d2 = fused
    B, N, D = x.shape
    M = B * N
    dp_w, doutp = w_cat.shape
    d1p = b1p.shape[1]
    d2p = b2p.shape[1]

    x_bytes = jnp.dtype(x.dtype).itemsize
    w_bytes = jnp.dtype(w_cat.dtype).itemsize
    o_bytes = x_bytes
    budget, vmem_limit = _vmem_budget_bytes()
    tm, tk = _choose_tiles(M, dp_w, d1p, d2p, x_bytes, w_bytes, o_bytes, budget)

    # Pad the contraction dim so every K tile is full (ragged reads must never
    # feed the accumulator); zero padding contributes exact zeros.
    dp = _round_up(dp_w, tk)
    x2d = x.reshape(M, D)
    if dp != D:
        x2d = jnp.pad(x2d, ((0, 0), (0, dp - D)))
    if dp != dp_w:
        w_cat = jnp.pad(w_cat, ((0, dp - dp_w), (0, 0)))

    grid = (pl.cdiv(M, tm), dp // tk)

    cost = pl.CostEstimate(
        flops=2 * M * dp * doutp,
        transcendentals=0,
        bytes_accessed=(x_bytes * M * dp
                        + w_bytes * (dp * doutp + doutp)
                        + o_bytes * M * doutp),
    )

    kernel = functools.partial(_parallel_kernel, d1p=d1p)
    y1p, y2p = pl.pallas_call(
        kernel,
        out_shape=(jax.ShapeDtypeStruct((M, d1p), x.dtype),
                   jax.ShapeDtypeStruct((M, d2p), x.dtype)),
        grid_spec=pltpu.PrefetchScalarGridSpec(
            num_scalar_prefetch=0,
            grid=grid,
            in_specs=[
                pl.BlockSpec((tm, tk), lambda i, k: (i, k)),     # x tile
                pl.BlockSpec((tk, doutp), lambda i, k: (k, 0)),  # fused W tile
                pl.BlockSpec((1, d1p), lambda i, k: (0, 0)),     # bias 1 (resident)
                pl.BlockSpec((1, d2p), lambda i, k: (0, 0)),     # bias 2 (resident)
            ],
            out_specs=[
                pl.BlockSpec((tm, d1p), lambda i, k: (i, 0)),    # branch-1 out
                pl.BlockSpec((tm, d2p), lambda i, k: (i, 0)),    # branch-2 out
            ],
            scratch_shapes=[pltpu.VMEM((tm, doutp), jnp.float32)],
        ),
        compiler_params=pltpu.CompilerParams(
            dimension_semantics=("parallel", "arbitrary"),
            vmem_limit_bytes=vmem_limit,
        ),
        cost_estimate=cost,
    )(x2d, w_cat, b1p, b2p)

    y1 = y1p[:, :d1] if d1p != d1 else y1p
    y2 = y2p[:, :d2] if d2p != d2 else y2p
    return y1.reshape(B, N, d1), y2.reshape(B, N, d2)


def parallel_module(x, w1, b1, w2, b2):
    """Convenience wrapper matching Parallel(Linear, Linear).forward(x).
    Prefer calling fuse_parallel_params() once and reusing the fused params."""
    return parallel_forward(x, fuse_parallel_params(w1, b1, w2, b2))


if __name__ == "__main__":
    # Small shapes consistent with the module: batch=2, seq=8, hidden=32.
    B, N, D = 2, 8, 32
    D1, D2 = 32, 32

    key = jax.random.PRNGKey(0)
    kx, kw1, kb1, kw2, kb2 = jax.random.split(key, 5)

    x = jax.random.normal(kx, (B, N, D), dtype=jnp.float32)
    w1 = jax.random.normal(kw1, (D, D1), dtype=jnp.float32) * (1.0 / D) ** 0.5
    b1 = jax.random.normal(kb1, (D1,), dtype=jnp.float32) * 0.01
    w2 = jax.random.normal(kw2, (D, D2), dtype=jnp.float32) * (1.0 / D) ** 0.5
    b2 = jax.random.normal(kb2, (D2,), dtype=jnp.float32) * 0.01

    # Fuse/pad the branch weights ONCE (parameter-init time), then run forward.
    fused = fuse_parallel_params(w1, b1, w2, b2)
    y1, y2 = parallel_forward(x, fused)
    jax.block_until_ready((y1, y2))

    # Reference: tuple of the two branch outputs on the shared input.
    ref1 = x @ w1 + b1
    ref2 = x @ w2 + b2
    assert y1.shape == ref1.shape and y2.shape == ref2.shape
    assert jnp.allclose(y1, ref1, atol=1e-4, rtol=1e-4)
    assert jnp.allclose(y2, ref2, atol=1e-4, rtol=1e-4)

    print("KERNEL_OK")
</pallas_src>

<mosaic_0001>
module attributes {stable_mosaic.version = 11 : i64} {
  func.func @_parallel_kernel(%arg0: i32, %arg1: i32, %arg2: memref<8x128xf32, #tpu.memory_space<vmem>>, %arg3: memref<128x256xf32, #tpu.memory_space<vmem>>, %arg4: memref<1x128xf32, #tpu.memory_space<vmem>>, %arg5: memref<1x128xf32, #tpu.memory_space<vmem>>, %arg6: memref<8x128xf32, #tpu.memory_space<vmem>>, %arg7: memref<8x128xf32, #tpu.memory_space<vmem>>, %arg8: memref<8x256xf32, #tpu.memory_space<vmem>>) attributes {dimension_semantics = [#tpu.dimension_semantics<parallel>, #tpu.dimension_semantics<arbitrary>], iteration_bounds = array<i64: 2, 1>, scalar_prefetch = 0 : i64, scratch_operands = 1 : i64, tpu.core_type = #tpu.core_type<tc>, window_params = [{transform_indices = @transform_0, window_bounds = array<i64: 8, 128>}, {transform_indices = @transform_1, window_bounds = array<i64: 128, 256>}, {pipeline_mode = #tpu.pipeline_mode<synchronous>, transform_indices = @transform_2, window_bounds = array<i64: 1, 128>}, {pipeline_mode = #tpu.pipeline_mode<synchronous>, transform_indices = @transform_3, window_bounds = array<i64: 1, 128>}, {transform_indices = @transform_4, window_bounds = array<i64: 8, 128>}, {transform_indices = @transform_5, window_bounds = array<i64: 8, 128>}]} {
    %c0_i32 = arith.constant 0 : i32
    %0 = arith.cmpi eq, %arg1, %c0_i32 : i32
    %1 = arith.extui %0 : i1 to i32
    %c0_i32_0 = arith.constant 0 : i32
    %2 = arith.cmpi ne, %1, %c0_i32_0 : i32
    scf.if %2 {
      %cst_10 = arith.constant 0.000000e+00 : f32
      %12 = vector.broadcast %cst_10 : f32 to vector<8x256xf32>
      %c0_11 = arith.constant 0 : index
      %c0_12 = arith.constant 0 : index
      %13 = vector.load %arg8[%c0_11, %c0_12] : memref<8x256xf32, #tpu.memory_space<vmem>>, vector<8x256xf32>
      tpu.vector_store %arg8[%c0_11, %c0_12], %12 {strides = array<i32>} : memref<8x256xf32, #tpu.memory_space<vmem>>, vector<8x256xf32>,
    } else {
    }
    %c0 = arith.constant 0 : index
    %c0_1 = arith.constant 0 : index
    %3 = vector.load %arg8[%c0, %c0_1] : memref<8x256xf32, #tpu.memory_space<vmem>>, vector<8x256xf32>
    %c0_2 = arith.constant 0 : index
    %c0_3 = arith.constant 0 : index
    %4 = vector.load %arg2[%c0_2, %c0_3] : memref<8x128xf32, #tpu.memory_space<vmem>>, vector<8x128xf32>
    %c0_4 = arith.constant 0 : index
    %c0_5 = arith.constant 0 : index
    %5 = vector.load %arg3[%c0_4, %c0_5] : memref<128x256xf32, #tpu.memory_space<vmem>>, vector<128x256xf32>
    %cst = arith.constant dense<0.000000e+00> : vector<8x256xf32>
    %6 = tpu.matmul %4, %5, %cst {dimension_numbers = #tpu.dot_dimension_numbers<[1], [0], [0], [1], [0, 0, 1, 1], [], []>} : vector<8x128xf32>, vector<128x256xf32>, vector<8x256xf32> -> vector<8x256xf32>
    %7 = arith.addf %3, %6 : vector<8x256xf32>
    %c0_6 = arith.constant 0 : index
    %c0_7 = arith.constant 0 : index
    %8 = vector.load %arg8[%c0_6, %c0_7] : memref<8x256xf32, #tpu.memory_space<vmem>>, vector<8x256xf32>
    tpu.vector_store %arg8[%c0_6, %c0_7], %7 {strides = array<i32>} : memref<8x256xf32, #tpu.memory_space<vmem>>, vector<8x256xf32>,
    %c0_i32_8 = arith.constant 0 : i32
    %9 = arith.cmpi eq, %arg1, %c0_i32_8 : i32
    %10 = arith.extui %9 : i1 to i32
    %c0_i32_9 = arith.constant 0 : i32
    %11 = arith.cmpi ne, %10, %c0_i32_9 : i32
    scf.if %11 {
      %c0_10 = arith.constant 0 : index
      %c0_11 = arith.constant 0 : index
      %12 = vector.load %arg8[%c0_10, %c0_11] : memref<8x256xf32, #tpu.memory_space<vmem>>, vector<8x256xf32>
      %13 = vector.extract_strided_slice %12 {offsets = [0, 0], sizes = [8, 128], strides = [1, 1]} : vector<8x256xf32> to vector<8x128xf32>
      %c0_12 = arith.constant 0 : index
      %c0_13 = arith.constant 0 : index
      %14 = vector.load %arg4[%c0_12, %c0_13] : memref<1x128xf32, #tpu.memory_space<vmem>>, vector<1x128xf32>
      %15 = vector.broadcast %14 : vector<1x128xf32> to vector<8x128xf32>
      %16 = arith.addf %13, %15 : vector<8x128xf32>
      %c0_14 = arith.constant 0 : index
      %c0_15 = arith.constant 0 : index
      %17 = vector.load %arg6[%c0_14, %c0_15] : memref<8x128xf32, #tpu.memory_space<vmem>>, vector<8x128xf32>
      tpu.vector_store %arg6[%c0_14, %c0_15], %16 {strides = array<i32>} : memref<8x128xf32, #tpu.memory_space<vmem>>, vector<8x128xf32>,
      %18 = vector.extract_strided_slice %12 {offsets = [0, 128], sizes = [8, 128], strides = [1, 1]} : vector<8x256xf32> to vector<8x128xf32>
      %c0_16 = arith.constant 0 : index
      %c0_17 = arith.constant 0 : index
      %19 = vector.load %arg5[%c0_16, %c0_17] : memref<1x128xf32, #tpu.memory_space<vmem>>, vector<1x128xf32>
      %20 = vector.broadcast %19 : vector<1x128xf32> to vector<8x128xf32>
      %21 = arith.addf %18, %20 : vector<8x128xf32>
      %c0_18 = arith.constant 0 : index
      %c0_19 = arith.constant 0 : index
      %22 = vector.load %arg7[%c0_18, %c0_19] : memref<8x128xf32, #tpu.memory_space<vmem>>, vector<8x128xf32>
      tpu.vector_store %arg7[%c0_18, %c0_19], %21 {strides = array<i32>} : memref<8x128xf32, #tpu.memory_space<vmem>>, vector<8x128xf32>,
    } else {
    }
    return
  }
  func.func @transform_0(%arg0: i32, %arg1: i32) -> (i32, i32) {
    %c0_i32 = arith.constant 0 : i32
    return %arg0, %arg1 : i32, i32
  }
  func.func @transform_1(%arg0: i32, %arg1: i32) -> (i32, i32) {
    %c0_i32 = arith.constant 0 : i32
    %c0_i32_0 = arith.constant 0 : i32
    return %arg1, %c0_i32 : i32, i32
  }
  func.func @transform_2(%arg0: i32, %arg1: i32) -> (i32, i32) {
    %c0_i32 = arith.constant 0 : i32
    %c0_i32_0 = arith.constant 0 : i32
    %c0_i32_1 = arith.constant 0 : i32
    return %c0_i32, %c0_i32_0 : i32, i32
  }
  func.func @transform_3(%arg0: i32, %arg1: i32) -> (i32, i32) {
    %c0_i32 = arith.constant 0 : i32
    %c0_i32_0 = arith.constant 0 : i32
    %c0_i32_1 = arith.constant 0 : i32
    return %c0_i32, %c0_i32_0 : i32, i32
  }
  func.func @transform_4(%arg0: i32, %arg1: i32) -> (i32, i32) {
    %c0_i32 = arith.constant 0 : i32
    %c0_i32_0 = arith.constant 0 : i32
    return %arg0, %c0_i32 : i32, i32
  }
  func.func @transform_5(%arg0: i32, %arg1: i32) -> (i32, i32) {
    %c0_i32 = arith.constant 0 : i32
    %c0_i32_0 = arith.constant 0 : i32
    return %arg0, %c0_i32 : i32, i32
  }
}

</mosaic_0001>

<llo_original>
// kernel: tpu_custom_call.1
$region0: #{tpu_custom_call.1}
  #allocation0 [shape = 'u32[]', space=smem, size = 0x4, offset = 0x4, fixed_abs, tag = 'smem constant byte address 0x4 - core index']
  #allocation1 [shape = 'u32[144,128]{1,0:T(1,128)}', space=vmem, size = 0x12000, scoped, tag = 'internal scratch']
  #allocation2 [shape = 'f32[8,256]{1,0:T(8,128)}', space=vmem, size = 0x2000, scoped, tag = 'scratch operand']
  %s0 = inlined_call_operand.hbm [shape: f32[16,128], index: 0, kind: input, shape index: {}]
  %s1 = inlined_call_operand.hbm [shape: f32[128,256], index: 1, kind: input, shape index: {}]
  %s2 = inlined_call_operand.vmem [shape: f32[1,128], index: 2, kind: input, shape index: {}]
  %s3 = inlined_call_operand.vmem [shape: f32[1,128], index: 3, kind: input, shape index: {}]
  %s4 = inlined_call_operand.hbm [shape: f32[16,128], index: 4, kind: output, shape index: {0}]
  %s5 = inlined_call_operand.hbm [shape: f32[16,128], index: 5, kind: output, shape index: {1}]
  %6 = xla_tuple %s4, %s5
  %s7 = sld [smem:[#allocation0]]
  $region73: #{tpu_custom_call.1} parent=0
    _
  %s9 = ssub.s32 1, %s7
  %s10 = scalar_select 0, %s9, %s7
  $region1: #{tpu_custom_call.1} parent=0
    #allocation3 [shape = 'u8[8192]{0}', space=vmem, size = 0x2000, scoped, tag = 'input window, operand 0']
    #allocation4 [shape = 's32[2]{0}', space=sflag, size = 0x8, scoped, tag = 'scoped memory for tpu_custom_call.1']
    #allocation5 [shape = 's32[2]{0}', space=sflag, size = 0x8, scoped, tag = 'scoped memory for tpu_custom_call.1']
    #allocation6 [shape = 'u8[131072]{0}', space=vmem, size = 0x20000, scoped, tag = 'input window, operand 1, single buffered']
    #allocation7 [shape = 's32[1]{0}', space=sflag, size = 0x4, scoped, tag = 'scoped memory for tpu_custom_call.1']
    #allocation8 [shape = 'u8[8192]{0}', space=vmem, size = 0x2000, scoped, tag = 'output window, operand 0']
    #allocation9 [shape = 'u8[8192]{0}', space=vmem, size = 0x2000, scoped, tag = 'output window, operand 1']
    #allocation10 [shape = 's32[2]{0}', space=sflag, size = 0x8, scoped, tag = 'scoped memory for tpu_custom_call.1']
    %11 = vsyncpa [#allocation4], 0
    %s12 = scalar_lea.sflag [#allocation4], 1
    %13 = vsyncpa %s12, 0
    %14 = vsyncpa [#allocation7], 0
    %15 = vsyncpa [#allocation5], 0
    %s16 = scalar_lea.sflag [#allocation5], 1
    %17 = vsyncpa %s16, 0
    %18 = vsyncpa [#allocation10], 0
    %s19 = scalar_lea.sflag [#allocation10], 1
    %20 = vsyncpa %s19, 0
    loop: start=0, step=1, limit=4
    $region2: #{tpu_custom_call.1} parent=1 // loop_pre_header
      _
    $region3: #{tpu_custom_call.1} parent=1 // loop_header
      %s22 = sphi 0, %s26
      %p23 = scmp.ge.s32.totalorder %s22, 4
      %s29 = sphi 0, %s41
      %s30 = sphi 0, %s37
      %s31 = sphi 0, %s29
      %s32 = sphi 0, %s30
      %s33 = sphi 0, %s31
      %s34 = sphi 0, %s32
      %s46 = sphi 0, %s48
      %s49 = sphi 0, %s46
      %s50 = sphi 0, %s49
      %s66 = sphi 0, %s50
      %s72 = sphi 0, %s74
      %s75 = sphi 0, %s72
      %s76 = sphi 0, %s75
      %s92 = sphi 0, %s76
      %s96 = sphi 0, %s96
      %s98 = sphi 0, %s96
      %s99 = sphi 0, %s98
      %s113 = sphi 0, %s99
      %s117 = sphi 0, %s117
      %s119 = sphi 0, %s117
      %s120 = sphi 0, %s119
      %s134 = sphi 0, %s120
      %s140 = sphi 0, %s142
      %s143 = sphi 0, %s140
      %s144 = sphi 0, %s143
      %s160 = sphi 0, %s144
      %s166 = sphi 0, %s168
      %s169 = sphi 0, %s166
      %s170 = sphi 0, %s169
      %s186 = sphi 0, %s170
    $region4: #{tpu_custom_call.1} parent=1 // loop_header_branch
      %25 = sbr.rel (%p23) target = $region8
    $region5: #{tpu_custom_call.1} parent=1 // loop_body
      %s27 = ssub.s32 %s22, 1
      %s28 = ssub.s32 %s22, 2
      %s35 = sadd.s32 1, %s30
      %p36 = scmp.ge.s32.totalorder %s35, 1
      %s37 = scalar_select %p36, 0, %s35
      %s38 = sadd.s32 1, %s29
      %s39 = scalar_select %p36, %s38, %s29
      %p40 = scmp.ge.s32.totalorder %s39, 2
      %s41 = scalar_select %p40, 0, %s39
      %s42 = ssub.s32 %s29, %s41
      %s43 = ssub.s32 %s30, %s37
      %s44 = sor.u32 %s42, %s43
      %p45 = scmp.eq.s32.totalorder %s44, 0
      %s47 = sadd.s32 %s46, 1
      %s48 = scalar_select %p45, %s46, %s47
      %p51 = pneg %p45
      %p52 = scmp.eq.s32.totalorder %s22, 1
      %p53 = por %p51, %p52
      %p54 = scmp.ne.s32.totalorder %s46, %s49
      %p55 = scmp.eq.s32.totalorder %s22, 0
      %p56 = por %p54, %p55
      %p57 = scmp.ne.s32.totalorder %s46, %s49
      %p58 = scmp.eq.s32.totalorder %s27, 1
      %p59 = por %p57, %p58
      %p60 = scmp.ne.s32.totalorder %s49, %s50
      %p61 = scmp.eq.s32.totalorder %s27, 0
      %p62 = por %p60, %p61
      %p63 = scmp.ne.s32.totalorder %s49, %s50
      %p64 = scmp.eq.s32.totalorder %s28, 1
      %p65 = por %p63, %p64
      %p67 = scmp.ne.s32.totalorder %s50, %s66
      %p68 = scmp.eq.s32.totalorder %s28, 0
      %p69 = por %p67, %p68
      %s70 = ssub.s32 %s30, %s37
      %p71 = scmp.eq.s32.totalorder %s70, 0
      %s73 = sadd.s32 %s72, 1
      %s74 = scalar_select %p71, %s72, %s73
      %p77 = pneg %p71
      %p78 = scmp.eq.s32.totalorder %s22, 1
      %p79 = por %p77, %p78
      %p80 = scmp.ne.s32.totalorder %s72, %s75
      %p81 = scmp.eq.s32.totalorder %s22, 0
      %p82 = por %p80, %p81
      %p83 = scmp.ne.s32.totalorder %s72, %s75
      %p84 = scmp.eq.s32.totalorder %s27, 1
      %p85 = por %p83, %p84
      %p86 = scmp.ne.s32.totalorder %s75, %s76
      %p87 = scmp.eq.s32.totalorder %s27, 0
      %p88 = por %p86, %p87
      %p89 = scmp.ne.s32.totalorder %s75, %s76
      %p90 = scmp.eq.s32.totalorder %s28, 1
      %p91 = por %p89, %p90
      %p93 = scmp.ne.s32.totalorder %s76, %s92
      %p94 = scmp.eq.s32.totalorder %s28, 0
      %p95 = por %p93, %p94
      %s97 = sadd.s32 %s96, 1
      %p100 = scmp.eq.s32.totalorder %s22, 1
      %p101 = scmp.ne.s32.totalorder %s96, %s98
      %p102 = scmp.eq.s32.totalorder %s22, 0
      %p103 = por %p101, %p102
      %p104 = scmp.ne.s32.totalorder %s96, %s98
      %p105 = scmp.eq.s32.totalorder %s27, 1
      %p106 = por %p104, %p105
      %p107 = scmp.ne.s32.totalorder %s98, %s99
      %p108 = scmp.eq.s32.totalorder %s27, 0
      %p109 = por %p107, %p108
      %p110 = scmp.ne.s32.totalorder %s98, %s99
      %p111 = scmp.eq.s32.totalorder %s28, 1
      %p112 = por %p110, %p111
      %p114 = scmp.ne.s32.totalorder %s99, %s113
      %p115 = scmp.eq.s32.totalorder %s28, 0
      %p116 = por %p114, %p115
      %s118 = sadd.s32 %s117, 1
      %p121 = scmp.eq.s32.totalorder %s22, 1
      %p122 = scmp.ne.s32.totalorder %s117, %s119
      %p123 = scmp.eq.s32.totalorder %s22, 0
      %p124 = por %p122, %p123
      %p125 = scmp.ne.s32.totalorder %s117, %s119
      %p126 = scmp.eq.s32.totalorder %s27, 1
      %p127 = por %p125, %p126
      %p128 = scmp.ne.s32.totalorder %s119, %s120
      %p129 = scmp.eq.s32.totalorder %s27, 0
      %p130 = por %p128, %p129
      %p131 = scmp.ne.s32.totalorder %s119, %s120
      %p132 = scmp.eq.s32.totalorder %s28, 1
      %p133 = por %p131, %p132
      %p135 = scmp.ne.s32.totalorder %s120, %s134
      %p136 = scmp.eq.s32.totalorder %s28, 0
      %p137 = por %p135, %p136
      %s138 = ssub.s32 %s29, %s41
      %p139 = scmp.eq.s32.totalorder %s138, 0
      %s141 = sadd.s32 %s140, 1
      %s142 = scalar_select %p139, %s140, %s141
      %p145 = pneg %p139
      %p146 = scmp.eq.s32.totalorder %s22, 1
      %p147 = por %p145, %p146
      %p148 = scmp.ne.s32.totalorder %s140, %s143
      %p149 = scmp.eq.s32.totalorder %s22, 0
      %p150 = por %p148, %p149
      %p151 = scmp.ne.s32.totalorder %s140, %s143
      %p152 = scmp.eq.s32.totalorder %s27, 1
      %p153 = por %p151, %p152
      %p154 = scmp.ne.s32.totalorder %s143, %s144
      %p155 = scmp.eq.s32.totalorder %s27, 0
      %p156 = por %p154, %p155
      %p157 = scmp.ne.s32.totalorder %s143, %s144
      %p158 = scmp.eq.s32.totalorder %s28, 1
      %p159 = por %p157, %p158
      %p161 = scmp.ne.s32.totalorder %s144, %s160
      %p162 = scmp.eq.s32.totalorder %s28, 0
      %p163 = por %p161, %p162
      %s164 = ssub.s32 %s29, %s41
      %p165 = scmp.eq.s32.totalorder %s164, 0
      %s167 = sadd.s32 %s166, 1
      %s168 = scalar_select %p165, %s166, %s167
      %p171 = pneg %p165
      %p172 = scmp.eq.s32.totalorder %s22, 1
      %p173 = por %p171, %p172
      %p174 = scmp.ne.s32.totalorder %s166, %s169
      %p175 = scmp.eq.s32.totalorder %s22, 0
      %p176 = por %p174, %p175
      %p177 = scmp.ne.s32.totalorder %s166, %s169
      %p178 = scmp.eq.s32.totalorder %s27, 1
      %p179 = por %p177, %p178
      %p180 = scmp.ne.s32.totalorder %s169, %s170
      %p181 = scmp.eq.s32.totalorder %s27, 0
      %p182 = por %p180, %p181
      %p183 = scmp.ne.s32.totalorder %s169, %s170
      %p184 = scmp.eq.s32.totalorder %s28, 1
      %p185 = por %p183, %p184
      %p187 = scmp.ne.s32.totalorder %s170, %s186
      %p188 = scmp.eq.s32.totalorder %s28, 0
      %p189 = por %p187, %p188
      %p190 = scmp.le.s32.totalorder 1, %s22
      %p191 = scmp.lt.s32.totalorder %s22, 3
      %p192 = pnand %p190, %p191
      %p193 = pneg %p192
      // Predicated region
      $region9: #{tpu_custom_call.1} parent=5 // pred_check
        _
      $region10: #{tpu_custom_call.1} parent=5 // pred_check_branch
        %195 = sbr.rel (%p192) target = $region12
      $region11: #{tpu_custom_call.1} parent=5 // pred_region
        %s196 = ssub.s32 %s22, 1
        // Predicated region
        $region13: #{tpu_custom_call.1} parent=11 // pred_check
          %p197 = pneg %p88
        $region14: #{tpu_custom_call.1} parent=11 // pred_check_branch
          %199 = sbr.rel (%p197) target = $region16
        $region15: #{tpu_custom_call.1} parent=11 // pred_region
          %s200 = smul.u32 16, %s32
          %s202 = ssub.s32 4096, 4096
          %203 = vsyncadd [#allocation7], %s202
          %s204 = smul.addr %s200, 2
          %s205 = smul.addr %s204, 128
          %s206 = scalar_lea.hbm %s1, %s205
          %s207 = sshll.u32 [#allocation6], 4
          %s208 = int_to_ptr.vmem [resolvable:$true] %s207
          %213 = dma.hbm_to_vmem [thread:$0]  %s206, 4096, %s208, [#allocation7], 256, 256, 16
        $region16: #{tpu_custom_call.1} parent=11 // pred_fallthru
          _
        // Predicated region
        $region17: #{tpu_custom_call.1} parent=11 // pred_check
          %p214 = pneg %p109
        $region18: #{tpu_custom_call.1} parent=11 // pred_check_branch
          %216 = sbr.rel (%p214) target = $region20
        $region19: #{tpu_custom_call.1} parent=11 // pred_region
          _
        $region20: #{tpu_custom_call.1} parent=11 // pred_fallthru
          _
        // Predicated region
        $region21: #{tpu_custom_call.1} parent=11 // pred_check
          %p217 = pneg %p130
        $region22: #{tpu_custom_call.1} parent=11 // pred_check_branch
          %219 = sbr.rel (%p217) target = $region24
        $region23: #{tpu_custom_call.1} parent=11 // pred_region
          _
        $region24: #{tpu_custom_call.1} parent=11 // pred_fallthru
          _
      $region12: #{tpu_custom_call.1} parent=5 // pred_fallthru
        _
      %p220 = scmp.lt.s32.totalorder %s22, 2
      // Predicated region
      $region25: #{tpu_custom_call.1} parent=5 // pred_check
        %p221 = pneg %p220
      $region26: #{tpu_custom_call.1} parent=5 // pred_check_branch
        %223 = sbr.rel (%p221) target = $region28
      $region27: #{tpu_custom_call.1} parent=5 // pred_region
        // Predicated region
        $region29: #{tpu_custom_call.1} parent=27 // pred_check
          %p224 = pneg %p56
        $region30: #{tpu_custom_call.1} parent=27 // pred_check_branch
          %226 = sbr.rel (%p224) target = $region32
        $region31: #{tpu_custom_call.1} parent=27 // pred_region
          %s227 = sand.u32 %s46, 1
          %s228 = scalar_lea.sflag [#allocation4], %s227
          %s229 = sand.u32 %s46, 1
          %s230 = smul.addr %s229, 8
          %s231 = scalar_lea.vmem [#allocation3], %s230
          %s233 = ssub.s32 128, 128
          %234 = vsyncadd %s228, %s233
          %s235 = sadd.s32 %s30, %s29
          %s236 = smul.addr %s235, 128
          %s237 = scalar_lea.hbm %s0, %s236
          %s239 = sshll.u32 %s231, 4
          %s240 = int_to_ptr.vmem [resolvable:$true] %s239
          %242 = dma.hbm_to_vmem [thread:$0]  %s237, 128, %s240, %s228
        $region32: #{tpu_custom_call.1} parent=27 // pred_fallthru
          _
      $region28: #{tpu_custom_call.1} parent=5 // pred_fallthru
        _
      %p243 = scmp.le.s32.totalorder 1, %s22
      %p244 = scmp.lt.s32.totalorder %s22, 3
      %p245 = pnand %p243, %p244
      %p246 = pneg %p245
      // Predicated region
      $region33: #{tpu_custom_call.1} parent=5 // pred_check
        _
      $region34: #{tpu_custom_call.1} parent=5 // pred_check_branch
        %248 = sbr.rel (%p245) target = $region36
      $region35: #{tpu_custom_call.1} parent=5 // pred_region
        %s249 = ssub.s32 %s22, 1
        %s250 = sand.u32 %s49, 1
        %s251 = scalar_lea.sflag [#allocation4], %s250
        %s252 = sand.u32 %s49, 1
        %s253 = smul.addr %s252, 8
        %s254 = scalar_lea.vmem [#allocation3], %s253
        // Predicated region
        $region37: #{tpu_custom_call.1} parent=35 // pred_check
          %p255 = pneg %p62
        $region38: #{tpu_custom_call.1} parent=35 // pred_check_branch
          %257 = sbr.rel (%p255) target = $region40
        $region39: #{tpu_custom_call.1} parent=35 // pred_region
          %258 = dma.done %s251, 128
        $region40: #{tpu_custom_call.1} parent=35 // pred_fallthru
          _
        // Predicated region
        $region41: #{tpu_custom_call.1} parent=35 // pred_check
          %p259 = pneg %p88
        $region42: #{tpu_custom_call.1} parent=35 // pred_check_branch
          %261 = sbr.rel (%p259) target = $region44
        $region43: #{tpu_custom_call.1} parent=35 // pred_region
          %262 = dma.done [#allocation7], 4096
        $region44: #{tpu_custom_call.1} parent=35 // pred_fallthru
          _
        %s263 = sand.u32 %s49, 1
        %s264 = scalar_lea.sflag [#allocation4], %s263
        %s265 = sand.u32 %s49, 1
        %s266 = smul.addr %s265, 8
        %s267 = scalar_lea.vmem [#allocation3], %s266
        %p268 = pneg %p62
        %p269 = pneg %p59
        %p270 = pneg %p88
        %p271 = pneg %p85
        %p272 = pneg %p109
        %p273 = pneg %p106
        %p274 = pneg %p130
        %p275 = pneg %p127
        %p276 = pneg %p156
        %p277 = pneg %p153
        %s278 = sand.u32 %s143, 1
        %s279 = scalar_lea.sflag [#allocation5], %s278
        %s280 = sand.u32 %s143, 1
        %s281 = smul.addr %s280, 8
        %s282 = scalar_lea.vmem [#allocation8], %s281
        %p283 = pneg %p182
        %p284 = pneg %p179
        %s285 = sand.u32 %s169, 1
        %s286 = scalar_lea.sflag [#allocation10], %s285
        %s287 = sand.u32 %s169, 1
        %s288 = smul.addr %s287, 8
        %s289 = scalar_lea.vmem [#allocation9], %s288
        %s290 = smul.u32 16, %s32
        %p291 = scmp.eq.s32.totalorder %s32, 0
        // Predicated region
        $region45: #{tpu_custom_call.1} parent=35 // pred_check
          %p292 = pneg %p291
        $region46: #{tpu_custom_call.1} parent=35 // pred_check_branch
          %294 = sbr.rel (%p292) target = $region48
        $region47: #{tpu_custom_call.1} parent=35 // pred_region
          %295 = vst [vmem:[#allocation2] sm:$0xff] 0.0
          %296 = vst [vmem:[#allocation2 + $0x8] sm:$0xff] 0.0
        $region48: #{tpu_custom_call.1} parent=35 // pred_fallthru
          _
        %v297 = vld [vmem:[#allocation2] sm:$0xff]
        %v298 = vld [vmem:[#allocation2 + $0x8] sm:$0xff]
        %v299 = vld [vmem:[%s254] sm:$0xff]
        %v300 = vld [vmem:[#allocation6] sm:$0xff]
        %v301 = vld [vmem:[#allocation6 + $0x8] sm:$0xff]
        %v302 = vld [vmem:[#allocation6 + $0x10] sm:$0xff]
        %v303 = vld [vmem:[#allocation6 + $0x18] sm:$0xff]
        %v304 = vld [vmem:[#allocation6 + $0x20] sm:$0xff]
        %v305 = vld [vmem:[#allocation6 + $0x28] sm:$0xff]
        %v306 = vld [vmem:[#allocation6 + $0x30] sm:$0xff]
        %v307 = vld [vmem:[#allocation6 + $0x38] sm:$0xff]
        %v308 = vld [vmem:[#allocation6 + $0x40] sm:$0xff]
        %v309 = vld [vmem:[#allocation6 + $0x48] sm:$0xff]
        %v310 = vld [vmem:[#allocation6 + $0x50] sm:$0xff]
        %v311 = vld [vmem:[#allocation6 + $0x58] sm:$0xff]
        %v312 = vld [vmem:[#allocation6 + $0x60] sm:$0xff]
        %v313 = vld [vmem:[#allocation6 + $0x68] sm:$0xff]
        %v314 = vld [vmem:[#allocation6 + $0x70] sm:$0xff]
        %v315 = vld [vmem:[#allocation6 + $0x78] sm:$0xff]
        %v316 = vld [vmem:[#allocation6 + $0x80] sm:$0xff]
        %v317 = vld [vmem:[#allocation6 + $0x88] sm:$0xff]
        %v318 = vld [vmem:[#allocation6 + $0x90] sm:$0xff]
        %v319 = vld [vmem:[#allocation6 + $0x98] sm:$0xff]
        %v320 = vld [vmem:[#allocation6 + $0xa0] sm:$0xff]
        %v321 = vld [vmem:[#allocation6 + $0xa8] sm:$0xff]
        %v322 = vld [vmem:[#allocation6 + $0xb0] sm:$0xff]
        %v323 = vld [vmem:[#allocation6 + $0xb8] sm:$0xff]
        %v324 = vld [vmem:[#allocation6 + $0xc0] sm:$0xff]
        %v325 = vld [vmem:[#allocation6 + $0xc8] sm:$0xff]
        %v326 = vld [vmem:[#allocation6 + $0xd0] sm:$0xff]
        %v327 = vld [vmem:[#allocation6 + $0xd8] sm:$0xff]
        %v328 = vld [vmem:[#allocation6 + $0xe0] sm:$0xff]
        %v329 = vld [vmem:[#allocation6 + $0xe8] sm:$0xff]
        %v330 = vld [vmem:[#allocation6 + $0xf0] sm:$0xff]
        %v331 = vld [vmem:[#allocation6 + $0xf8] sm:$0xff]
        %332 = vmatprep.subr.mxu0 %v301
        %333 = vmatpush1.msra.mxu0 %v300
        %334 = vmatprep.subr.mxu0 %v303
        %335 = vmatpush1.msra.mxu0 %v302
        %336 = vmatprep.subr.mxu0 %v305
        %337 = vmatpush1.msra.mxu0 %v304
        %338 = vmatprep.subr.mxu0 %v307
        %339 = vmatpush1.msra.mxu0 %v306
        %340 = vmatprep.subr.mxu0 %v309
        %341 = vmatpush1.msra.mxu0 %v308
        %342 = vmatprep.subr.mxu0 %v311
        %343 = vmatpush1.msra.mxu0 %v310
        %344 = vmatprep.subr.mxu0 %v313
        %345 = vmatpush1.msra.mxu0 %v312
        %346 = vmatprep.subr.mxu0 %v315
        %347 = vmatpush1.msra.mxu0 %v314
        %348 = vmatprep.subr.mxu0 %v317
        %349 = vmatpush1.msra.mxu0 %v316
        %350 = vmatprep.subr.mxu0 %v319
        %351 = vmatpush1.msra.mxu0 %v318
        %352 = vmatprep.subr.mxu0 %v321
        %353 = vmatpush1.msra.mxu0 %v320
        %354 = vmatprep.subr.mxu0 %v323
        %355 = vmatpush1.msra.mxu0 %v322
        %356 = vmatprep.subr.mxu0 %v325
        %357 = vmatpush1.msra.mxu0 %v324
        %358 = vmatprep.subr.mxu0 %v327
        %359 = vmatpush1.msra.mxu0 %v326
        %360 = vmatprep.subr.mxu0 %v329
        %361 = vmatpush1.msra.mxu0 %v328
        %362 = vmatprep.subr.mxu0 %v331
        %363 = vmatpush1.msra.mxu0 %v330
        %364 = vmatprep.subr.mxu0 0.0
        %365 = vmatpush1.msra.mxu0 0.0
        %366 = vmatprep.subr.mxu0 0.0
        %367 = vmatpush1.msra.mxu0 0.0
        %368 = vmatprep.subr.mxu0 0.0
        %369 = vmatpush1.msra.mxu0 0.0
        %370 = vmatprep.subr.mxu0 0.0
        %371 = vmatpush1.msra.mxu0 0.0
        %372 = vmatprep.subr.mxu0 0.0
        %373 = vmatpush1.msra.mxu0 0.0
        %374 = vmatprep.subr.mxu0 0.0
        %375 = vmatpush1.msra.mxu0 0.0
        %376 = vmatprep.subr.mxu0 0.0
        %377 = vmatpush1.msra.mxu0 0.0
        %378 = vmatprep.subr.mxu0 0.0
        %379 = vmatpush1.msra.mxu0 0.0
        %380 = vmatprep.subr.mxu0 0.0
        %381 = vmatpush1.msra.mxu0 0.0
        %382 = vmatprep.subr.mxu0 0.0
        %383 = vmatpush1.msra.mxu0 0.0
        %384 = vmatprep.subr.mxu0 0.0
        %385 = vmatpush1.msra.mxu0 0.0
        %386 = vmatprep.subr.mxu0 0.0
        %387 = vmatpush1.msra.mxu0 0.0
        %388 = vmatprep.subr.mxu0 0.0
        %389 = vmatpush1.msra.mxu0 0.0
        %390 = vmatprep.subr.mxu0 0.0
        %391 = vmatpush1.msra.mxu0 0.0
        %392 = vmatprep.subr.mxu0 0.0
        %393 = vmatpush1.msra.mxu0 0.0
        %394 = vmatprep.subr.mxu0 0.0
        %395 = vmatpush1.msra.mxu0 0.0
        %396 = vmatprep.mubr.f32.mxu0 0.0
        %397 = vmatmul.mubr.f32.gmra.mrb[0].mxu0 %v299
        %v398 = vpop.f32.mrb[0].mxu0
        %v399 = vadd.f32 0.0, %v398
        %v400 = vpop.f32.mrb[0].mxu0
        %v401 = vadd.f32 0.0, %v400
        %402 = vdwg.mxu0
        %v403 = vadd.f32 %v297, %v399
        %v404 = vadd.f32 %v298, %v401
        %405 = vst [vmem:[#allocation2] sm:$0xff] %v403
        %406 = vst [vmem:[#allocation2 + $0x8] sm:$0xff] %v404
        // Predicated region
        $region49: #{tpu_custom_call.1} parent=35 // pred_check
          %p407 = pneg %p291
        $region50: #{tpu_custom_call.1} parent=35 // pred_check_branch
          %409 = sbr.rel (%p407) target = $region52
        $region51: #{tpu_custom_call.1} parent=35 // pred_region
          %v410 = vld [vmem:[#allocation2] sm:$0xff]
          %v411 = vld [vmem:[#allocation2 + $0x8] sm:$0xff]
          %v412 = vld [vmem:[%s2] sm:$0x1]
          %v414 = vlaneseq
          %v415 = vshrl.u32 %v414, 7
          %v416 = vsub.s32 0, %v415
          %v417 = vrot.slane %v412, %v416
          %v419 = vadd.f32 %v410, %v417
          %420 = vst [vmem:[%s282] sm:$0xff] %v419
          %v421 = vld [vmem:[%s3] sm:$0x1]
          %v423 = vlaneseq
          %v424 = vshrl.u32 %v423, 7
          %v425 = vsub.s32 0, %v424
          %v426 = vrot.slane %v421, %v425
          %v428 = vadd.f32 %v411, %v426
          %429 = vst [vmem:[%s289] sm:$0xff] %v428
        $region52: #{tpu_custom_call.1} parent=35 // pred_fallthru
          _
        %s430 = sand.u32 %s143, 1
        %s431 = scalar_lea.sflag [#allocation5], %s430
        %s432 = sand.u32 %s143, 1
        %s433 = smul.addr %s432, 8
        %s434 = scalar_lea.vmem [#allocation8], %s433
        %s435 = sand.u32 %s169, 1
        %s436 = scalar_lea.sflag [#allocation10], %s435
        %s437 = sand.u32 %s169, 1
        %s438 = smul.addr %s437, 8
        %s439 = scalar_lea.vmem [#allocation9], %s438
        // Predicated region
        $region53: #{tpu_custom_call.1} parent=35 // pred_check
          %p440 = pneg %p153
        $region54: #{tpu_custom_call.1} parent=35 // pred_check_branch
          %442 = sbr.rel (%p440) target = $region56
        $region55: #{tpu_custom_call.1} parent=35 // pred_region
          %s444 = ssub.s32 128, 128
          %445 = vsyncadd %s431, %s444
          %s446 = smul.addr %s31, 128
          %s447 = scalar_lea.hbm %s4, %s446
          %s449 = sshll.u32 %s434, 4
          %s450 = int_to_ptr.vmem [resolvable:$true] %s449
          %452 = dma.vmem_to_hbm [thread:$0]  %s450, 128, %s447, %s431
        $region56: #{tpu_custom_call.1} parent=35 // pred_fallthru
          _
        // Predicated region
        $region57: #{tpu_custom_call.1} parent=35 // pred_check
          %p453 = pneg %p179
        $region58: #{tpu_custom_call.1} parent=35 // pred_check_branch
          %455 = sbr.rel (%p453) target = $region60
        $region59: #{tpu_custom_call.1} parent=35 // pred_region
          %s457 = ssub.s32 128, 128
          %458 = vsyncadd %s436, %s457
          %s459 = smul.addr %s31, 128
          %s460 = scalar_lea.hbm %s5, %s459
          %s462 = sshll.u32 %s439, 4
          %s463 = int_to_ptr.vmem [resolvable:$true] %s462
          %465 = dma.vmem_to_hbm [thread:$0]  %s463, 128, %s460, %s436
        $region60: #{tpu_custom_call.1} parent=35 // pred_fallthru
          _
      $region36: #{tpu_custom_call.1} parent=5 // pred_fallthru
        _
      %p466 = scmp.le.s32.totalorder 2, %s22
      // Predicated region
      $region61: #{tpu_custom_call.1} parent=5 // pred_check
        %p467 = pneg %p466
      $region62: #{tpu_custom_call.1} parent=5 // pred_check_branch
        %469 = sbr.rel (%p467) target = $region64
      $region63: #{tpu_custom_call.1} parent=5 // pred_region
        %s470 = ssub.s32 %s22, 2
        // Predicated region
        $region65: #{tpu_custom_call.1} parent=63 // pred_check
          %p471 = pneg %p159
        $region66: #{tpu_custom_call.1} parent=63 // pred_check_branch
          %473 = sbr.rel (%p471) target = $region68
        $region67: #{tpu_custom_call.1} parent=63 // pred_region
          %s474 = sand.u32 %s144, 1
          %s475 = scalar_lea.sflag [#allocation5], %s474
          %s476 = sand.u32 %s144, 1
          %s477 = smul.addr %s476, 8
          %s478 = scalar_lea.vmem [#allocation8], %s477
          %479 = dma.done %s475, 128
        $region68: #{tpu_custom_call.1} parent=63 // pred_fallthru
          _
        // Predicated region
        $region69: #{tpu_custom_call.1} parent=63 // pred_check
          %p480 = pneg %p185
        $region70: #{tpu_custom_call.1} parent=63 // pred_check_branch
          %482 = sbr.rel (%p480) target = $region72
        $region71: #{tpu_custom_call.1} parent=63 // pred_region
          %s483 = sand.u32 %s170, 1
          %s484 = scalar_lea.sflag [#allocation10], %s483
          %s485 = sand.u32 %s170, 1
          %s486 = smul.addr %s485, 8
          %s487 = scalar_lea.vmem [#allocation9], %s486
          %488 = dma.done %s484, 128
        $region72: #{tpu_custom_call.1} parent=63 // pred_fallthru
          _
      $region64: #{tpu_custom_call.1} parent=5 // pred_fallthru
        _
    $region6: #{tpu_custom_call.1} parent=1 // loop_footer
      %s26 = sadd.s32 1, %s22
    $region7: #{tpu_custom_call.1} parent=1 // loop_footer_branch
      %21 = sbr.rel target = $region3
    $region8: #{tpu_custom_call.1} parent=1 // loop_exit
      _
    %489 = vsyncpa [#allocation4], 1
    %s490 = scalar_lea.sflag [#allocation4], 1
    %491 = vsyncpa %s490, 1
    %492 = vsyncpa [#allocation7], 1
    %493 = vsyncpa [#allocation5], 1
    %s494 = scalar_lea.sflag [#allocation5], 1
    %495 = vsyncpa %s494, 1
    %496 = vsyncpa [#allocation10], 1
    %s497 = scalar_lea.sflag [#allocation10], 1
    %498 = vsyncpa %s497, 1

</llo_original>
